<compile_context>
chip_gen: v6e
topology: v6e:2x2x1
jax: 0.10.0
libtpu: 0.0.40
codegen_flags: <defaults>
</compile_context>

<pallas_src>
import functools
import math

import jax
import jax.numpy as jnp
from jax.experimental import pallas as pl
from jax.experimental.pallas import tpu as pltpu

HIDDEN = 32          # ActorCriticNetwork hidden width (synthetic init)
LANES = 128          # outputs padded to full lane width (unmasked vst)
MAX_TILE_ROWS = 512  # batch-tile rows; multiple of 16 for bf16 sublane packing


def _round_up(n, m):
    return (n + m - 1) // m * m


# --------------------------------------------------------------------------
# Kernels
# --------------------------------------------------------------------------
def _trunk_and_head(x_ref, w1_ref, b1_ref, w2_ref, b2_ref, wh_ref, bh_ref,
                    action_dim):
    """Shared trunk + fused (actor|critic) head.

    Returns (head, col, is_mean) where head is (TB, LANES) f32 with
    cols [0, A) = tanh action mean, col A = state value, cols > A = 0.
    """
    x = x_ref[...]                                                # (TB, D) bf16
    h1 = jnp.tanh(jnp.dot(x, w1_ref[...],
                          preferred_element_type=jnp.float32) + b1_ref[...])
    h2 = jnp.tanh(jnp.dot(h1.astype(w2_ref.dtype), w2_ref[...],
                          preferred_element_type=jnp.float32) + b2_ref[...])
    head = jnp.dot(h2.astype(wh_ref.dtype), wh_ref[...],
                   preferred_element_type=jnp.float32) + bh_ref[...]
    col = jax.lax.broadcasted_iota(jnp.int32, head.shape, 1)
    is_mean = col < action_dim
    head = jnp.where(is_mean, jnp.tanh(head), head)   # tanh only the mean cols
    return head, col, is_mean


def _forward_kernel(x_ref, w1_ref, b1_ref, w2_ref, b2_ref, wh_ref, bh_ref,
                    out_ref, *, action_dim):
    head, _, _ = _trunk_and_head(x_ref, w1_ref, b1_ref, w2_ref, b2_ref,
                                 wh_ref, bh_ref, action_dim)
    out_ref[...] = head                               # lane-dense 128-wide store


def _evaluate_kernel(x_ref, a_ref, w1_ref, b1_ref, w2_ref, b2_ref,
                     wh_ref, bh_ref, out_ref, *, action_dim, action_std):
    """Forward pass + Normal log_prob fused into one launch.

    Output layout: cols [0,A) mean, col A value, col A+1 sum-of-logprob."""
    head, col, is_mean = _trunk_and_head(x_ref, w1_ref, b1_ref, w2_ref, b2_ref,
                                         wh_ref, bh_ref, action_dim)
    acts = a_ref[...]                                             # (TB, LANES)
    var = action_std * action_std
    log_c = -math.log(action_std) - 0.5 * math.log(2.0 * math.pi)
    per = jnp.where(is_mean,
                    -((acts - head) ** 2) / (2.0 * var) + log_c,
                    0.0)
    logp = per.sum(axis=-1, keepdims=True)                        # (TB, 1)
    out_ref[...] = jnp.where(col == action_dim + 1, logp, head)


# --------------------------------------------------------------------------
# Parameters
# --------------------------------------------------------------------------
def init_params(input_dim, action_dim, hidden=HIDDEN, seed=0):
    """Deterministic synthetic parameters, (in_features, out_features) layout.
    Note: biases are zero-initialized (torch.nn.Linear draws them uniform)."""
    k = jax.random.PRNGKey(seed)
    ks = jax.random.split(k, 4)

    def lin(key, fan_in, fan_out):
        scale = 1.0 / jnp.sqrt(jnp.float32(fan_in))
        w = jax.random.uniform(key, (fan_in, fan_out), jnp.float32,
                               -scale, scale)
        b = jnp.zeros((1, fan_out), jnp.float32)
        return w, b

    w1, b1 = lin(ks[0], input_dim, hidden)
    w2, b2 = lin(ks[1], hidden, hidden)
    wa, ba = lin(ks[2], hidden, action_dim)
    wc, bc = lin(ks[3], hidden, 1)
    return dict(w1=w1, b1=b1, w2=w2, b2=b2, wa=wa, ba=ba, wc=wc, bc=bc)


def _fuse_params(params):
    """Fuse actor/critic heads into one lane-padded (H, LANES) weight and cast
    MXU operands to bf16 (biases stay f32 so the VPU path is f32 on v5e)."""
    wh = jnp.concatenate([params["wa"], params["wc"]], axis=1)    # (H, A+1)
    bh = jnp.concatenate([params["ba"], params["bc"]], axis=1)    # (1, A+1)
    pad = LANES - wh.shape[1]
    wh = jnp.pad(wh, ((0, 0), (0, pad)))
    bh = jnp.pad(bh, ((0, 0), (0, pad)))
    return (params["w1"].astype(jnp.bfloat16), params["b1"].astype(jnp.float32),
            params["w2"].astype(jnp.bfloat16), params["b2"].astype(jnp.float32),
            wh.astype(jnp.bfloat16), bh.astype(jnp.float32))


def _tiling(B):
    tb = min(MAX_TILE_ROWS, _round_up(B, 16))
    bp = _round_up(B, tb)
    return tb, bp


def _weight_spec(arr):
    return pl.BlockSpec(arr.shape, lambda i: (0, 0))


# --------------------------------------------------------------------------
# Wrappers
# --------------------------------------------------------------------------
def ppo_forward(x, params, action_std_val=0.5):
    """Returns (action_mean, action_std, state_value) — the torch forward's
    (Normal(mean, std), value) expressed as arrays."""
    if x.ndim == 1:
        x = x[None, :]                                # mimic x.unsqueeze(0)
    B, D = x.shape
    A = params["wa"].shape[1]
    assert A + 2 <= LANES
    TB, Bp = _tiling(B)

    xp = jnp.pad(x.astype(jnp.float32), ((0, Bp - B), (0, 0)))
    xp = xp.astype(jnp.bfloat16)
    w1, b1, w2, b2, wh, bh = _fuse_params(params)

    out = pl.pallas_call(
        functools.partial(_forward_kernel, action_dim=A),
        out_shape=jax.ShapeDtypeStruct((Bp, LANES), jnp.float32),
        grid=(Bp // TB,),
        in_specs=[pl.BlockSpec((TB, D), lambda i: (i, 0)),
                  _weight_spec(w1), _weight_spec(b1),
                  _weight_spec(w2), _weight_spec(b2),
                  _weight_spec(wh), _weight_spec(bh)],
        out_specs=pl.BlockSpec((TB, LANES), lambda i: (i, 0)),
        compiler_params=pltpu.CompilerParams(
            dimension_semantics=("parallel",)),
    )(xp, w1, b1, w2, b2, wh, bh)

    mean = out[:B, :A]
    value = out[:B, A:A + 1]
    std = jnp.full_like(mean, action_std_val)     # action_std.expand_as(mean)
    return mean, std, value


def evaluate_actions(x, actions, params, action_std_val=0.5):
    """Fused single-launch version of PPOAgent.evaluate_actions."""
    if x.ndim == 1:
        x = x[None, :]
    if actions.ndim == 1:
        actions = actions[None, :]
    B, D = x.shape
    A = params["wa"].shape[1]
    assert A + 2 <= LANES
    TB, Bp = _tiling(B)

    xp = jnp.pad(x.astype(jnp.float32), ((0, Bp - B), (0, 0)))
    xp = xp.astype(jnp.bfloat16)
    ap = jnp.pad(actions.astype(jnp.float32),
                 ((0, Bp - B), (0, LANES - A)))
    w1, b1, w2, b2, wh, bh = _fuse_params(params)

    out = pl.pallas_call(
        functools.partial(_evaluate_kernel, action_dim=A,
                          action_std=float(action_std_val)),
        out_shape=jax.ShapeDtypeStruct((Bp, LANES), jnp.float32),
        grid=(Bp // TB,),
        in_specs=[pl.BlockSpec((TB, D), lambda i: (i, 0)),
                  pl.BlockSpec((TB, LANES), lambda i: (i, 0)),
                  _weight_spec(w1), _weight_spec(b1),
                  _weight_spec(w2), _weight_spec(b2),
                  _weight_spec(wh), _weight_spec(bh)],
        out_specs=pl.BlockSpec((TB, LANES), lambda i: (i, 0)),
        compiler_params=pltpu.CompilerParams(
            dimension_semantics=("parallel",)),
    )(xp, ap, w1, b1, w2, b2, wh, bh)

    logp = out[:B, A + 1]
    value = out[:B, A]
    # entropy of Normal(mean, const std) is a constant per action dim
    ent_per_dim = 0.5 + 0.5 * math.log(2.0 * math.pi) + math.log(action_std_val)
    ent = jnp.full((B,), A * ent_per_dim, jnp.float32)
    return logp, jnp.squeeze(value), ent


# ---- plain-JAX Normal-distribution glue (matches torch.distributions.Normal)
def normal_log_prob(mean, std, actions):
    var = std * std
    return (-((actions - mean) ** 2) / (2.0 * var)
            - jnp.log(std) - 0.5 * jnp.log(2.0 * jnp.pi))


def normal_entropy(std):
    return 0.5 + 0.5 * jnp.log(2.0 * jnp.pi) + jnp.log(std)


def act(x, params, key, action_std_val=0.5):
    # dist.sample() / reparameterized sampling is plain-JAX glue outside the kernel.
    mean, std, value = ppo_forward(x, params, action_std_val)
    action = mean + std * jax.random.normal(key, mean.shape, mean.dtype)
    logp = normal_log_prob(mean, std, action).sum(axis=-1)
    return action, logp, value


if __name__ == "__main__":
    input_dim, action_dim, batch = 16, 4, 2
    params = init_params(input_dim, action_dim)

    key = jax.random.PRNGKey(0)
    kx, ka = jax.random.split(key)
    x = jax.random.normal(kx, (batch, input_dim), jnp.float32)
    actions = jax.random.normal(ka, (batch, action_dim), jnp.float32)

    mean, std, value = ppo_forward(x, params)
    jax.block_until_ready((mean, std, value))

    logp, val_sq, ent = evaluate_actions(x, actions, params)
    jax.block_until_ready((logp, val_sq, ent))

    assert mean.shape == (batch, action_dim)
    assert std.shape == (batch, action_dim)
    assert value.shape == (batch, 1)
    assert logp.shape == (batch,)
    assert ent.shape == (batch,)

    # cross-check the fused in-kernel log_prob against the plain-JAX glue
    ref_logp = normal_log_prob(mean, std, actions).sum(axis=-1)
    assert jnp.allclose(logp, ref_logp, atol=1e-3, rtol=1e-3)

    print("KERNEL_OK")
</pallas_src>

<mosaic_0001>
module attributes {stable_mosaic.version = 11 : i64} {
  func.func @_forward_kernel(%arg0: i32, %arg1: memref<16x16xbf16, #tpu.memory_space<vmem>>, %arg2: memref<16x32xbf16, #tpu.memory_space<vmem>>, %arg3: memref<1x32xf32, #tpu.memory_space<vmem>>, %arg4: memref<32x32xbf16, #tpu.memory_space<vmem>>, %arg5: memref<1x32xf32, #tpu.memory_space<vmem>>, %arg6: memref<32x128xbf16, #tpu.memory_space<vmem>>, %arg7: memref<1x128xf32, #tpu.memory_space<vmem>>, %arg8: memref<16x128xf32, #tpu.memory_space<vmem>>) attributes {dimension_semantics = [#tpu.dimension_semantics<parallel>], iteration_bounds = array<i64: 1>, scalar_prefetch = 0 : i64, scratch_operands = 0 : i64, tpu.core_type = #tpu.core_type<tc>, window_params = [{transform_indices = @transform_0, window_bounds = array<i64: 16, 16>}, {pipeline_mode = #tpu.pipeline_mode<synchronous>, transform_indices = @transform_1, window_bounds = array<i64: 16, 32>}, {pipeline_mode = #tpu.pipeline_mode<synchronous>, transform_indices = @transform_2, window_bounds = array<i64: 1, 32>}, {pipeline_mode = #tpu.pipeline_mode<synchronous>, transform_indices = @transform_3, window_bounds = array<i64: 32, 32>}, {pipeline_mode = #tpu.pipeline_mode<synchronous>, transform_indices = @transform_4, window_bounds = array<i64: 1, 32>}, {pipeline_mode = #tpu.pipeline_mode<synchronous>, transform_indices = @transform_5, window_bounds = array<i64: 32, 128>}, {pipeline_mode = #tpu.pipeline_mode<synchronous>, transform_indices = @transform_6, window_bounds = array<i64: 1, 128>}, {transform_indices = @transform_7, window_bounds = array<i64: 16, 128>}]} {
    %c0 = arith.constant 0 : index
    %c0_0 = arith.constant 0 : index
    %0 = vector.load %arg1[%c0, %c0_0] : memref<16x16xbf16, #tpu.memory_space<vmem>>, vector<16x16xbf16>
    %c0_1 = arith.constant 0 : index
    %c0_2 = arith.constant 0 : index
    %1 = vector.load %arg2[%c0_1, %c0_2] : memref<16x32xbf16, #tpu.memory_space<vmem>>, vector<16x32xbf16>
    %cst = arith.constant dense<0.000000e+00> : vector<16x32xf32>
    %2 = tpu.matmul %0, %1, %cst {dimension_numbers = #tpu.dot_dimension_numbers<[1], [0], [0], [1], [0, 0, 1, 1], [], []>} : vector<16x16xbf16>, vector<16x32xbf16>, vector<16x32xf32> -> vector<16x32xf32>
    %c0_3 = arith.constant 0 : index
    %c0_4 = arith.constant 0 : index
    %3 = vector.load %arg3[%c0_3, %c0_4] : memref<1x32xf32, #tpu.memory_space<vmem>>, vector<1x32xf32>
    %4 = vector.broadcast %3 : vector<1x32xf32> to vector<16x32xf32>
    %5 = arith.addf %2, %4 : vector<16x32xf32>
    %6 = math.tanh %5 : vector<16x32xf32>
    %7 = arith.truncf %6 : vector<16x32xf32> to vector<16x32xbf16>
    %c0_5 = arith.constant 0 : index
    %c0_6 = arith.constant 0 : index
    %8 = vector.load %arg4[%c0_5, %c0_6] : memref<32x32xbf16, #tpu.memory_space<vmem>>, vector<32x32xbf16>
    %cst_7 = arith.constant dense<0.000000e+00> : vector<16x32xf32>
    %9 = tpu.matmul %7, %8, %cst_7 {dimension_numbers = #tpu.dot_dimension_numbers<[1], [0], [0], [1], [0, 0, 1, 1], [], []>} : vector<16x32xbf16>, vector<32x32xbf16>, vector<16x32xf32> -> vector<16x32xf32>
    %c0_8 = arith.constant 0 : index
    %c0_9 = arith.constant 0 : index
    %10 = vector.load %arg5[%c0_8, %c0_9] : memref<1x32xf32, #tpu.memory_space<vmem>>, vector<1x32xf32>
    %11 = vector.broadcast %10 : vector<1x32xf32> to vector<16x32xf32>
    %12 = arith.addf %9, %11 : vector<16x32xf32>
    %13 = math.tanh %12 : vector<16x32xf32>
    %14 = arith.truncf %13 : vector<16x32xf32> to vector<16x32xbf16>
    %c0_10 = arith.constant 0 : index
    %c0_11 = arith.constant 0 : index
    %15 = vector.load %arg6[%c0_10, %c0_11] : memref<32x128xbf16, #tpu.memory_space<vmem>>, vector<32x128xbf16>
    %cst_12 = arith.constant dense<0.000000e+00> : vector<16x128xf32>
    %16 = tpu.matmul %14, %15, %cst_12 {dimension_numbers = #tpu.dot_dimension_numbers<[1], [0], [0], [1], [0, 0, 1, 1], [], []>} : vector<16x32xbf16>, vector<32x128xbf16>, vector<16x128xf32> -> vector<16x128xf32>
    %c0_13 = arith.constant 0 : index
    %c0_14 = arith.constant 0 : index
    %17 = vector.load %arg7[%c0_13, %c0_14] : memref<1x128xf32, #tpu.memory_space<vmem>>, vector<1x128xf32>
    %18 = vector.broadcast %17 : vector<1x128xf32> to vector<16x128xf32>
    %19 = arith.addf %16, %18 : vector<16x128xf32>
    %20 = tpu.iota {dimensions = array<i32: 1>} : vector<16x128xi32>
    %c4_i32 = arith.constant 4 : i32
    %21 = vector.broadcast %c4_i32 : i32 to vector<16x128xi32>
    %22 = arith.cmpi slt, %20, %21 : vector<16x128xi32>
    %23 = math.tanh %19 : vector<16x128xf32>
    %24 = arith.select %22, %23, %19 : vector<16x128xi1>, vector<16x128xf32>
    %c0_15 = arith.constant 0 : index
    %c0_16 = arith.constant 0 : index
    %25 = vector.load %arg8[%c0_15, %c0_16] : memref<16x128xf32, #tpu.memory_space<vmem>>, vector<16x128xf32>
    tpu.vector_store %arg8[%c0_15, %c0_16], %24 {strides = array<i32>} : memref<16x128xf32, #tpu.memory_space<vmem>>, vector<16x128xf32>,
    return
  }
  func.func @transform_0(%arg0: i32) -> (i32, i32) {
    %c0_i32 = arith.constant 0 : i32
    %c0_i32_0 = arith.constant 0 : i32
    return %arg0, %c0_i32 : i32, i32
  }
  func.func @transform_1(%arg0: i32) -> (i32, i32) {
    %c0_i32 = arith.constant 0 : i32
    %c0_i32_0 = arith.constant 0 : i32
    %c0_i32_1 = arith.constant 0 : i32
    return %c0_i32, %c0_i32_0 : i32, i32
  }
  func.func @transform_2(%arg0: i32) -> (i32, i32) {
    %c0_i32 = arith.constant 0 : i32
    %c0_i32_0 = arith.constant 0 : i32
    %c0_i32_1 = arith.constant 0 : i32
    return %c0_i32, %c0_i32_0 : i32, i32
  }
  func.func @transform_3(%arg0: i32) -> (i32, i32) {
    %c0_i32 = arith.constant 0 : i32
    %c0_i32_0 = arith.constant 0 : i32
    %c0_i32_1 = arith.constant 0 : i32
    return %c0_i32, %c0_i32_0 : i32, i32
  }
  func.func @transform_4(%arg0: i32) -> (i32, i32) {
    %c0_i32 = arith.constant 0 : i32
    %c0_i32_0 = arith.constant 0 : i32
    %c0_i32_1 = arith.constant 0 : i32
    return %c0_i32, %c0_i32_0 : i32, i32
  }
  func.func @transform_5(%arg0: i32) -> (i32, i32) {
    %c0_i32 = arith.constant 0 : i32
    %c0_i32_0 = arith.constant 0 : i32
    %c0_i32_1 = arith.constant 0 : i32
    return %c0_i32, %c0_i32_0 : i32, i32
  }
  func.func @transform_6(%arg0: i32) -> (i32, i32) {
    %c0_i32 = arith.constant 0 : i32
    %c0_i32_0 = arith.constant 0 : i32
    %c0_i32_1 = arith.constant 0 : i32
    return %c0_i32, %c0_i32_0 : i32, i32
  }
  func.func @transform_7(%arg0: i32) -> (i32, i32) {
    %c0_i32 = arith.constant 0 : i32
    %c0_i32_0 = arith.constant 0 : i32
    return %arg0, %c0_i32 : i32, i32
  }
}

</mosaic_0001>

<llo_original>
// kernel: tpu_custom_call.1
$region0: #{tpu_custom_call.1}
  #allocation0 [shape = 'u32[]', space=smem, size = 0x4, offset = 0x4, fixed_abs, tag = 'smem constant byte address 0x4 - core index']
  #allocation1 [shape = 'u32[144,128]{1,0:T(1,128)}', space=vmem, size = 0x12000, scoped, tag = 'internal scratch']
  %s0 = inlined_call_operand.hbm [shape: bf16[16,16], index: 0, kind: input, shape index: {}]
  %s1 = inlined_call_operand.hbm [shape: bf16[16,32], index: 1, kind: input, shape index: {}]
  %s2 = inlined_call_operand.vmem [shape: f32[1,32], index: 2, kind: input, shape index: {}]
  %s3 = inlined_call_operand.hbm [shape: bf16[32,32], index: 3, kind: input, shape index: {}]
  %s4 = inlined_call_operand.vmem [shape: f32[1,32], index: 4, kind: input, shape index: {}]
  %s5 = inlined_call_operand.hbm [shape: bf16[32,128], index: 5, kind: input, shape index: {}]
  %s6 = inlined_call_operand.vmem [shape: f32[1,128], index: 6, kind: input, shape index: {}]
  %s7 = inlined_call_operand.hbm [shape: f32[16,128], index: 7, kind: output, shape index: {}]
  %s8 = sld [smem:[#allocation0]]
  $region54: #{tpu_custom_call.1} parent=0
    _
  %s10 = ssub.s32 1, %s8
  %s11 = scalar_select 0, %s10, %s8
  $region1: #{tpu_custom_call.1} parent=0
    #allocation2 [shape = 'u8[4096]{0}', space=vmem, size = 0x1000, scoped, tag = 'input window, operand 0, single buffered']
    #allocation3 [shape = 's32[1]{0}', space=sflag, size = 0x4, scoped, tag = 'scoped memory for tpu_custom_call.1']
    #allocation4 [shape = 's32[1]{0}', space=sflag, size = 0x4, scoped, tag = 'scoped memory for tpu_custom_call.1']
    #allocation5 [shape = 'u8[4096]{0}', space=vmem, size = 0x1000, scoped, tag = 'input window, operand 1, single buffered']
    #allocation6 [shape = 's32[1]{0}', space=sflag, size = 0x4, scoped, tag = 'scoped memory for tpu_custom_call.1']
    #allocation7 [shape = 'u8[8192]{0}', space=vmem, size = 0x2000, scoped, tag = 'input window, operand 3, single buffered']
    #allocation8 [shape = 'u8[8192]{0}', space=vmem, size = 0x2000, scoped, tag = 'input window, operand 5, single buffered']
    #allocation9 [shape = 's32[1]{0}', space=sflag, size = 0x4, scoped, tag = 'scoped memory for tpu_custom_call.1']
    #allocation10 [shape = 'u8[8192]{0}', space=vmem, size = 0x2000, scoped, tag = 'output window, operand 0, single buffered']
    %12 = vsyncpa [#allocation3], 0
    %13 = vsyncpa [#allocation6], 0
    %14 = vsyncpa [#allocation9], 0
    %15 = vsyncpa [#allocation4], 0
    // Predicated region
    $region2: #{tpu_custom_call.1} parent=1 // pred_check
      _
    $region3: #{tpu_custom_call.1} parent=1 // pred_check_branch
      %17 = sbr.rel (0) target = $region5
    $region4: #{tpu_custom_call.1} parent=1 // pred_region
      %s19 = ssub.s32 128, 128
      %20 = vsyncadd [#allocation3], %s19
      %s21 = sshll.u32 [#allocation2], 4
      %s22 = int_to_ptr.vmem [resolvable:$true] %s21
      %27 = dma.hbm_to_vmem [thread:$0]  %s0, 128, %s22, [#allocation3], 64, 64, 4
    $region5: #{tpu_custom_call.1} parent=1 // pred_fallthru
      _
    // Predicated region
    $region6: #{tpu_custom_call.1} parent=1 // pred_check
      _
    $region7: #{tpu_custom_call.1} parent=1 // pred_check_branch
      %29 = sbr.rel (0) target = $region9
    $region8: #{tpu_custom_call.1} parent=1 // pred_region
      %s31 = ssub.s32 128, 128
      %32 = vsyncadd [#allocation6], %s31
      %s33 = sshll.u32 [#allocation5], 4
      %s34 = int_to_ptr.vmem [resolvable:$true] %s33
      %39 = dma.hbm_to_vmem [thread:$0]  %s1, 128, %s34, [#allocation6], 64, 64, 4
    $region9: #{tpu_custom_call.1} parent=1 // pred_fallthru
      _
    // Predicated region
    $region10: #{tpu_custom_call.1} parent=1 // pred_check
      _
    $region11: #{tpu_custom_call.1} parent=1 // pred_check_branch
      %41 = sbr.rel (0) target = $region13
    $region12: #{tpu_custom_call.1} parent=1 // pred_region
      _
    $region13: #{tpu_custom_call.1} parent=1 // pred_fallthru
      _
    // Predicated region
    $region14: #{tpu_custom_call.1} parent=1 // pred_check
      _
    $region15: #{tpu_custom_call.1} parent=1 // pred_check_branch
      %43 = sbr.rel (0) target = $region17
    $region16: #{tpu_custom_call.1} parent=1 // pred_region
      %s45 = ssub.s32 256, 256
      %46 = vsyncadd [#allocation6], %s45
      %s47 = sshll.u32 [#allocation7], 4
      %s48 = int_to_ptr.vmem [resolvable:$true] %s47
      %53 = dma.hbm_to_vmem [thread:$0]  %s3, 256, %s48, [#allocation6], 64, 64, 4
    $region17: #{tpu_custom_call.1} parent=1 // pred_fallthru
      _
    // Predicated region
    $region18: #{tpu_custom_call.1} parent=1 // pred_check
      _
    $region19: #{tpu_custom_call.1} parent=1 // pred_check_branch
      %55 = sbr.rel (0) target = $region21
    $region20: #{tpu_custom_call.1} parent=1 // pred_region
      _
    $region21: #{tpu_custom_call.1} parent=1 // pred_fallthru
      _
    // Predicated region
    $region22: #{tpu_custom_call.1} parent=1 // pred_check
      _
    $region23: #{tpu_custom_call.1} parent=1 // pred_check_branch
      %57 = sbr.rel (0) target = $region25
    $region24: #{tpu_custom_call.1} parent=1 // pred_region
      %s59 = ssub.s32 256, 256
      %60 = vsyncadd [#allocation9], %s59
      %s61 = sshll.u32 [#allocation8], 4
      %s62 = int_to_ptr.vmem [resolvable:$true] %s61
      %67 = dma.hbm_to_vmem [thread:$0]  %s5, 256, %s62, [#allocation9], 64, 64, 4
    $region25: #{tpu_custom_call.1} parent=1 // pred_fallthru
      _
    // Predicated region
    $region26: #{tpu_custom_call.1} parent=1 // pred_check
      _
    $region27: #{tpu_custom_call.1} parent=1 // pred_check_branch
      %69 = sbr.rel (0) target = $region29
    $region28: #{tpu_custom_call.1} parent=1 // pred_region
      _
    $region29: #{tpu_custom_call.1} parent=1 // pred_fallthru
      _
    // Predicated region
    $region30: #{tpu_custom_call.1} parent=1 // pred_check
      _
    $region31: #{tpu_custom_call.1} parent=1 // pred_check_branch
      %71 = sbr.rel (0) target = $region33
    $region32: #{tpu_custom_call.1} parent=1 // pred_region
      %72 = dma.done [#allocation3], 128
    $region33: #{tpu_custom_call.1} parent=1 // pred_fallthru
      _
    // Predicated region
    $region34: #{tpu_custom_call.1} parent=1 // pred_check
      _
    $region35: #{tpu_custom_call.1} parent=1 // pred_check_branch
      %74 = sbr.rel (0) target = $region37
    $region36: #{tpu_custom_call.1} parent=1 // pred_region
      %75 = dma.done [#allocation6], 128
    $region37: #{tpu_custom_call.1} parent=1 // pred_fallthru
      _
    // Predicated region
    $region38: #{tpu_custom_call.1} parent=1 // pred_check
      _
    $region39: #{tpu_custom_call.1} parent=1 // pred_check_branch
      %77 = sbr.rel (0) target = $region41
    $region40: #{tpu_custom_call.1} parent=1 // pred_region
      %78 = dma.done [#allocation6], 256
    $region41: #{tpu_custom_call.1} parent=1 // pred_fallthru
      _
    // Predicated region
    $region42: #{tpu_custom_call.1} parent=1 // pred_check
      _
    $region43: #{tpu_custom_call.1} parent=1 // pred_check_branch
      %80 = sbr.rel (0) target = $region45
    $region44: #{tpu_custom_call.1} parent=1 // pred_region
      %81 = dma.done [#allocation9], 256
    $region45: #{tpu_custom_call.1} parent=1 // pred_fallthru
      _
    %v83 = vld [vmem:[#allocation2] sm:$0xf]
    %v84 = vld [vmem:[#allocation2 + $0x4] sm:$0xf]
    %v85 = vld [vmem:[#allocation5] sm:$0xf]
    %v86 = vld [vmem:[#allocation5 + $0x4] sm:$0xf]
    %v87 = vld [vmem:[%s2] sm:$0x1]
    %v89 = vlaneseq
    %v90 = vshrl.u32 %v89, 7
    %v91 = vsub.s32 0, %v90
    %v92 = vrot.slane %v87, %v91
    %v96 = vunpack.c.l.b16 %v83
    %v97 = vunpack.c.l.b16 %v84
    %v98 = vpack.c.b16 %v97, %v96
    %v101 = vunpack.c.l.b16 %v85
    %v102 = vunpack.c.l.b16 %v86
    %v103 = vpack.c.b16 %v102, %v101
    %vm105 = vcmask 130048
    %v107 = vsel %vm105, %v98, 0
    %109 = vmatprep.subr.bf16.mxu0 0
    %110 = vmatpush1.bf16.msra.mxu0 0
    %111 = vmatprep.subr.bf16.mxu0 0
    %112 = vmatpush1.bf16.msra.mxu0 0
    %113 = vmatprep.subr.bf16.mxu0 0
    %114 = vmatpush1.bf16.msra.mxu0 0
    %115 = vmatprep.subr.bf16.mxu0 0
    %116 = vmatpush1.bf16.msra.mxu0 0
    %117 = vmatprep.subr.bf16.mxu0 0
    %118 = vmatpush1.bf16.msra.mxu0 0
    %119 = vmatprep.subr.bf16.mxu0 0
    %120 = vmatpush1.bf16.msra.mxu0 0
    %121 = vmatprep.subr.bf16.mxu0 0
    %122 = vmatpush1.bf16.msra.mxu0 0
    %123 = vmatprep.subr.bf16.mxu0 0
    %124 = vmatpush1.bf16.msra.mxu0 %v103
    %125 = vmatprep.subr.bf16.mxu0 0
    %126 = vmatpush2.bf16.msra.mxu0 0
    %127 = vmatprep.subr.bf16.mxu0 0
    %128 = vmatpush2.bf16.msra.mxu0 0
    %129 = vmatprep.subr.bf16.mxu0 0
    %130 = vmatpush2.bf16.msra.mxu0 0
    %131 = vmatprep.subr.bf16.mxu0 0
    %132 = vmatpush2.bf16.msra.mxu0 0
    %133 = vmatprep.subr.bf16.mxu0 0
    %134 = vmatpush2.bf16.msra.mxu0 0
    %135 = vmatprep.subr.bf16.mxu0 0
    %136 = vmatpush2.bf16.msra.mxu0 0
    %137 = vmatprep.subr.bf16.mxu0 0
    %138 = vmatpush2.bf16.msra.mxu0 0
    %139 = vmatprep.subr.bf16.mxu0 0
    %140 = vmatpush2.bf16.msra.mxu0 0
    %141 = vmatprep.mubr.bf16.mxu0 0
    %142 = vmatmul.mubr.bf16.gmra.mxu0 %v107
    %v143 = vpop.f32.mrf.mxu0
    %v144 = vadd.f32 %v92, %v143
    %v145 = vpop.f32.mrf.mxu0
    %v146 = vpop.f32.mrf.mxu0
    %v147 = vadd.f32 %v92, %v146
    %v148 = vpop.f32.mrf.mxu0
    %149 = vdwg.mxu0
    %v150 = vtanh.pop %v144
    %v151 = vtanh.pop %v147
    %v152 = vpack.c.bf16 %v151, %v150
    %v153 = vld [vmem:[#allocation7] sm:$0xf]
    %v154 = vld [vmem:[#allocation7 + $0x4] sm:$0xf]
    %v155 = vld [vmem:[#allocation7 + $0x8] sm:$0xf]
    %v156 = vld [vmem:[#allocation7 + $0xc] sm:$0xf]
    %v157 = vld [vmem:[%s4] sm:$0x1]
    %v159 = vlaneseq
    %v160 = vshrl.u32 %v159, 7
    %v161 = vsub.s32 0, %v160
    %v162 = vrot.slane %v157, %v161
    %v168 = vunpack.c.l.b16 %v153
    %v169 = vunpack.c.l.b16 %v154
    %v170 = vunpack.c.l.b16 %v155
    %v171 = vunpack.c.l.b16 %v156
    %v172 = vpack.c.b16 %v169, %v168
    %v173 = vpack.c.b16 %v171, %v170
    %vm176 = vcmask 261120
    %v178 = vsel %vm176, %v152, 0
    %180 = vmatprep.subr.bf16.mxu0 0
    %181 = vmatpush1.bf16.msra.mxu0 0
    %182 = vmatprep.subr.bf16.mxu0 0
    %183 = vmatpush1.bf16.msra.mxu0 0
    %184 = vmatprep.subr.bf16.mxu0 0
    %185 = vmatpush1.bf16.msra.mxu0 0
    %186 = vmatprep.subr.bf16.mxu0 0
    %187 = vmatpush1.bf16.msra.mxu0 0
    %188 = vmatprep.subr.bf16.mxu0 0
    %189 = vmatpush1.bf16.msra.mxu0 0
    %190 = vmatprep.subr.bf16.mxu0 0
    %191 = vmatpush1.bf16.msra.mxu0 0
    %192 = vmatprep.subr.bf16.mxu0 0
    %193 = vmatpush1.bf16.msra.mxu0 %v173
    %194 = vmatprep.subr.bf16.mxu0 0
    %195 = vmatpush1.bf16.msra.mxu0 %v172
    %196 = vmatprep.subr.bf16.mxu0 0
    %197 = vmatpush2.bf16.msra.mxu0 0
    %198 = vmatprep.subr.bf16.mxu0 0
    %199 = vmatpush2.bf16.msra.mxu0 0
    %200 = vmatprep.subr.bf16.mxu0 0
    %201 = vmatpush2.bf16.msra.mxu0 0
    %202 = vmatprep.subr.bf16.mxu0 0
    %203 = vmatpush2.bf16.msra.mxu0 0
    %204 = vmatprep.subr.bf16.mxu0 0
    %205 = vmatpush2.bf16.msra.mxu0 0
    %206 = vmatprep.subr.bf16.mxu0 0
    %207 = vmatpush2.bf16.msra.mxu0 0
    %208 = vmatprep.subr.bf16.mxu0 0
    %209 = vmatpush2.bf16.msra.mxu0 0
    %210 = vmatprep.subr.bf16.mxu0 0
    %211 = vmatpush2.bf16.msra.mxu0 0
    %212 = vmatprep.mubr.bf16.mxu0 0
    %213 = vmatmul.mubr.bf16.gmra.mxu0 %v178
    %v214 = vpop.f32.mrf.mxu0
    %v215 = vadd.f32 %v162, %v214
    %v216 = vpop.f32.mrf.mxu0
    %v217 = vpop.f32.mrf.mxu0
    %v218 = vadd.f32 %v162, %v217
    %v219 = vpop.f32.mrf.mxu0
    %220 = vdwg.mxu0
    %v221 = vtanh.pop %v215
    %v222 = vtanh.pop %v218
    %v223 = vpack.c.bf16 %v222, %v221
    %v224 = vld [vmem:[#allocation8] sm:$0xf]
    %v225 = vld [vmem:[#allocation8 + $0x4] sm:$0xf]
    %v226 = vld [vmem:[#allocation8 + $0x8] sm:$0xf]
    %v227 = vld [vmem:[#allocation8 + $0xc] sm:$0xf]
    %v228 = vld [vmem:[%s6] sm:$0x1]
    %v230 = vlaneseq
    %v231 = vshrl.u32 %v230, 7
    %v232 = vsub.s32 0, %v231
    %v233 = vrot.slane %v228, %v232
    %v239 = vunpack.c.l.b16 %v224
    %v240 = vunpack.c.l.b16 %v225
    %v241 = vunpack.c.l.b16 %v226
    %v242 = vunpack.c.l.b16 %v227
    %v243 = vpack.c.b16 %v240, %v239
    %v244 = vpack.c.b16 %v242, %v241
    %v248 = vsel %vm176, %v223, 0
    %250 = vmatprep.subr.bf16.mxu0 0
    %251 = vmatpush1.bf16.msra.mxu0 0
    %252 = vmatprep.subr.bf16.mxu0 0
    %253 = vmatpush1.bf16.msra.mxu0 0
    %254 = vmatprep.subr.bf16.mxu0 0
    %255 = vmatpush1.bf16.msra.mxu0 0
    %256 = vmatprep.subr.bf16.mxu0 0
    %257 = vmatpush1.bf16.msra.mxu0 0
    %258 = vmatprep.subr.bf16.mxu0 0
    %259 = vmatpush1.bf16.msra.mxu0 0
    %260 = vmatprep.subr.bf16.mxu0 0
    %261 = vmatpush1.bf16.msra.mxu0 0
    %262 = vmatprep.subr.bf16.mxu0 0
    %263 = vmatpush1.bf16.msra.mxu0 %v244
    %264 = vmatprep.subr.bf16.mxu0 0
    %265 = vmatpush1.bf16.msra.mxu0 %v243
    %266 = vmatprep.subr.bf16.mxu0 0
    %267 = vmatpush2.bf16.msra.mxu0 0
    %268 = vmatprep.subr.bf16.mxu0 0
    %269 = vmatpush2.bf16.msra.mxu0 0
    %270 = vmatprep.subr.bf16.mxu0 0
    %271 = vmatpush2.bf16.msra.mxu0 0
    %272 = vmatprep.subr.bf16.mxu0 0
    %273 = vmatpush2.bf16.msra.mxu0 0
    %274 = vmatprep.subr.bf16.mxu0 0
    %275 = vmatpush2.bf16.msra.mxu0 0
    %276 = vmatprep.subr.bf16.mxu0 0
    %277 = vmatpush2.bf16.msra.mxu0 0
    %278 = vmatprep.subr.bf16.mxu0 0
    %279 = vmatpush2.bf16.msra.mxu0 0
    %280 = vmatprep.subr.bf16.mxu0 0
    %281 = vmatpush2.bf16.msra.mxu0 0
    %282 = vmatprep.mubr.bf16.mxu0 0
    %283 = vmatmul.mubr.bf16.gmra.mxu0 %v248
    %v284 = vpop.f32.mrf.mxu0
    %v285 = vadd.f32 %v233, %v284
    %v286 = vpop.f32.mrf.mxu0
    %v287 = vpop.f32.mrf.mxu0
    %v288 = vadd.f32 %v233, %v287
    %v289 = vpop.f32.mrf.mxu0
    %290 = vdwg.mxu0
    %v291 = vlaneseq
    %v292 = vand.u32 %v291, 127
    %vm293 = vcmp.lt.s32.totalorder %v292, 4
    %v294 = vtanh.pop %v285
    %v295 = vtanh.pop %v288
    %v296 = vsel %vm293, %v294, %v285
    %v297 = vsel %vm293, %v295, %v288
    %298 = vst [vmem:[#allocation10] sm:$0xff] %v296
    %299 = vst [vmem:[#allocation10 + $0x8] sm:$0xff] %v297
    // Predicated region
    $region46: #{tpu_custom_call.1} parent=1 // pred_check
      _
    $region47: #{tpu_custom_call.1} parent=1 // pred_check_branch
      %301 = sbr.rel (0) target = $region49
    $region48: #{tpu_custom_call.1} parent=1 // pred_region
      %s303 = ssub.s32 256, 256
      %304 = vsyncadd [#allocation4], %s303
      %s305 = sshll.u32 [#allocation10], 4
      %s306 = int_to_ptr.vmem [resolvable:$true] %s305
      %311 = dma.vmem_to_hbm [thread:$0]  %s306, 256, %s7, [#allocation4], 128, 128, 8
    $region49: #{tpu_custom_call.1} parent=1 // pred_fallthru
      _
    // Predicated region
    $region50: #{tpu_custom_call.1} parent=1 // pred_check
      _
    $region51: #{tpu_custom_call.1} parent=1 // pred_check_branch
      %313 = sbr.rel (0) target = $region53
    $region52: #{tpu_custom_call.1} parent=1 // pred_region
      %314 = dma.done [#allocation4], 256
    $region53: #{tpu_custom_call.1} parent=1 // pred_fallthru
      _
    %315 = vsyncpa [#allocation3], 1
    %316 = vsyncpa [#allocation6], 1
    %317 = vsyncpa [#allocation9], 1
    %318 = vsyncpa [#allocation4], 1

</llo_original>
